<compile_context>
chip_gen: v6e
topology: v6e:2x2x1
jax: 0.10.0
libtpu: 0.0.40
codegen_flags: <defaults>
</compile_context>

<pallas_src>
import jax
import jax.numpy as jnp
from jax.experimental import pallas as pl
from jax.experimental.pallas import tpu as pltpu

LANES = 128


def _round_up(x, m):
    return ((x + m - 1) // m) * m


def _tpu_config():
    """Per-generation (max_tile_rows, num_splits, vmem_limit_bytes)."""
    kind = ""
    try:
        kind = jax.devices()[0].device_kind.lower()
    except Exception:
        pass
    if "v5 lite" in kind or "v5lite" in kind or "v5e" in kind:
        # Single TensorCore, 16 MiB default scoped VMEM, ~0.82 TB/s HBM:
        # 4096-row tiles (8 MiB of double-buffered inputs) already sit on the
        # roofline plateau; bigger tiles would hit the scoped-VMEM limit.
        return 4096, 1, None
    if "v6 lite" in kind or "v6lite" in kind or "v6e" in kind:
        # Single TensorCore, 128 MiB physical VMEM: 4 MiB blocks squeeze the
        # last few % of step-overhead amortization; lift the scoped limit.
        return 8192, 1, 48 << 20
    # v7x (2 TensorCores / chip) and unknown chips: default scoped VMEM,
    # 2-way parallel split so both cores participate.
    return 4096, 2, None


def masked_bce_loss(predictions, labels):
    """Mean BCE over elements where labels == 1 (NaN if there are none).

    predictions: probabilities in (0, 1); cast to f32 (no-op for f32 inputs).
    labels: {0, 1} values, any dtype — passed through natively (prefer int8 /
        bool / bf16 upstream; the kernel only compares labels against 1).
    """
    assert predictions.shape == labels.shape
    n = predictions.size

    p_flat = jnp.ravel(predictions).astype(jnp.float32)
    l_flat = jnp.ravel(labels)                 # native-dtype pass-through

    main = (n // LANES) * LANES                # lane-aligned part -> kernel
    rows = main // LANES

    if rows > 0:
        if main == n:
            p2d = p_flat.reshape(rows, LANES)
            l2d = l_flat.reshape(rows, LANES)
        else:
            p2d = p_flat[:main].reshape(rows, LANES)
            l2d = l_flat[:main].reshape(rows, LANES)

        # Sublane packing granularity of the narrowest input dtype
        # (f32 -> 8, bf16 -> 16, int8/bool -> 32); used only to pick a
        # friendly tile height, never to pad the arrays.
        sub = max(8, 32 // l2d.dtype.itemsize)

        max_tile_rows, num_splits, vmem_limit = _tpu_config()
        tile_rows = min(max_tile_rows, _round_up(rows, sub))
        if num_splits > 1 and _round_up(rows, sub) >= num_splits * sub:
            # Keep every TensorCore busy on small inputs: shrink the tile
            # before collapsing to a single split.
            tile_rows = min(tile_rows,
                            _round_up(pl.cdiv(rows, num_splits), sub))
        else:
            num_splits = 1

        tiles_total = pl.cdiv(rows, tile_rows)
        num_splits = min(num_splits, tiles_total)
        tiles_per_split = pl.cdiv(tiles_total, num_splits)

        # Logical tiles >= tail_threshold take the masked (select) path:
        # the partial last block (if rows % tile_rows != 0) and any clamped
        # duplicate tiles (when num_splits*tiles_per_split > tiles_total).
        last_partial = (rows % tile_rows) != 0
        tail_threshold = tiles_total - 1 if last_partial else tiles_total

        def in_index_map(s, i):
            # Clamp duplicated tiles so the DMA stays in bounds; their
            # contribution is zeroed by the in-kernel row mask.
            t = jnp.minimum(s * tiles_per_split + i, tiles_total - 1)
            return (t, 0)

        def kernel(p_ref, l_ref, sum_ref, cnt_ref):
            s = pl.program_id(0)
            i = pl.program_id(1)

            @pl.when(i == 0)
            def _init():
                sum_ref[...] = jnp.zeros_like(sum_ref)
                cnt_ref[...] = jnp.zeros_like(cnt_ref)

            t = s * tiles_per_split + i        # logical (unclamped) tile id
            p = p_ref[...].astype(jnp.float32)
            l = l_ref[...]
            # Selected labels are all 1 -> BCE term is -clamp(log(p), -100).
            neg_log = -jnp.maximum(jnp.log(p), -100.0)

            @pl.when(t < tail_threshold)
            def _fast():
                # Fully in-bounds tile: cheapest mask-multiply form keeps the
                # per-vreg VALU work low enough to stay HBM-bound on v7x.
                m = (l == 1).astype(jnp.float32)
                sum_ref[...] += (m * neg_log).reshape(
                    tile_rows // 8, 8, LANES).sum(axis=0)
                cnt_ref[...] += m.reshape(
                    tile_rows // 8, 8, LANES).sum(axis=0)

            @pl.when(t >= tail_threshold)
            def _tail():
                # Partial last block / clamped duplicate tile: MUST use a
                # select so NaNs from log() of stale VMEM rows cannot leak
                # through a 0 * NaN product.
                row_ids = (jax.lax.broadcasted_iota(
                    jnp.int32, (tile_rows, LANES), 0) + t * tile_rows)
                mask = jnp.logical_and(row_ids < rows, l == 1)
                contrib = jnp.where(mask, neg_log, 0.0)
                sum_ref[...] += contrib.reshape(
                    tile_rows // 8, 8, LANES).sum(axis=0)
                cnt_ref[...] += mask.astype(jnp.float32).reshape(
                    tile_rows // 8, 8, LANES).sum(axis=0)

        cost = pl.CostEstimate(
            flops=6 * main,
            transcendentals=main,
            bytes_accessed=main * (4 + l2d.dtype.itemsize),
        )
        cp_kwargs = dict(dimension_semantics=("parallel", "arbitrary"))
        if vmem_limit is not None:
            cp_kwargs["vmem_limit_bytes"] = vmem_limit

        sum_out, cnt_out = pl.pallas_call(
            kernel,
            out_shape=(
                jax.ShapeDtypeStruct((num_splits, 8, LANES), jnp.float32),
                jax.ShapeDtypeStruct((num_splits, 8, LANES), jnp.float32),
            ),
            grid_spec=pltpu.PrefetchScalarGridSpec(
                num_scalar_prefetch=0,
                grid=(num_splits, tiles_per_split),
                in_specs=[
                    pl.BlockSpec((tile_rows, LANES), in_index_map),
                    pl.BlockSpec((tile_rows, LANES), in_index_map),
                ],
                out_specs=[
                    pl.BlockSpec((None, 8, LANES), lambda s, i: (s, 0, 0)),
                    pl.BlockSpec((None, 8, LANES), lambda s, i: (s, 0, 0)),
                ],
            ),
            compiler_params=pltpu.CompilerParams(**cp_kwargs),
            cost_estimate=cost,
        )(p2d, l2d)

        total_sum = jnp.sum(sum_out)
        total_cnt = jnp.sum(cnt_out)
    else:
        total_sum = jnp.float32(0.0)
        total_cnt = jnp.float32(0.0)

    if main != n:
        # < 128-element ragged tail: plain JAX (far cheaper than a host-side
        # pad, which would rewrite both full arrays in HBM).
        p_tail = p_flat[main:]
        l_tail = l_flat[main:]
        t_mask = l_tail == 1
        total_sum = total_sum + jnp.sum(
            jnp.where(t_mask, -jnp.maximum(jnp.log(p_tail), -100.0), 0.0))
        total_cnt = total_cnt + jnp.sum(t_mask.astype(jnp.float32))

    # 0/0 -> NaN when no label equals 1 (matches PyTorch's mean over empty).
    return (total_sum / total_cnt).astype(jnp.float32)


if __name__ == "__main__":
    def ref_loss(p, l):
        # Pure-JAX reference: full PyTorch BCE formula under the mask.
        mask = l == 1.0
        log_p = jnp.maximum(jnp.log(p), -100.0)
        log_1mp = jnp.maximum(jnp.log1p(-p), -100.0)
        per = -(l * log_p + (1.0 - l) * log_1mp)
        return jnp.sum(jnp.where(mask, per, 0.0)) / jnp.sum(mask)

    key = jax.random.PRNGKey(0)
    kp, kl = jax.random.split(key)

    # Small NCHW-shaped example inputs: batch=2, channels=4, spatial=16x16.
    shape = (2, 4, 16, 16)
    predictions = jax.random.uniform(kp, shape, dtype=jnp.float32,
                                     minval=1e-4, maxval=1.0 - 1e-4)
    labels = (jax.random.uniform(kl, shape) < 0.5).astype(jnp.float32)

    loss = masked_bce_loss(predictions, labels)
    jax.block_until_ready(loss)
    ref = ref_loss(predictions, labels)
    assert jnp.allclose(loss, ref, rtol=1e-5, atol=1e-5), (loss, ref)

    # Ragged shape (2*4*17*17 = 2312 = 18*128 + 8): exercises the in-kernel
    # partial-last-block masked path and the <128-element plain-JAX tail.
    shape2 = (2, 4, 17, 17)
    kp2, kl2 = jax.random.split(jax.random.PRNGKey(1))
    predictions2 = jax.random.uniform(kp2, shape2, dtype=jnp.float32,
                                      minval=1e-4, maxval=1.0 - 1e-4)
    labels2 = (jax.random.uniform(kl2, shape2) < 0.5).astype(jnp.float32)
    loss2 = masked_bce_loss(predictions2, labels2)
    jax.block_until_ready(loss2)
    ref2 = ref_loss(predictions2, labels2)
    assert jnp.allclose(loss2, ref2, rtol=1e-5, atol=1e-5), (loss2, ref2)

    print("KERNEL_OK")
</pallas_src>

<mosaic_0001>
module attributes {stable_mosaic.version = 11 : i64} {
  func.func @kernel(%arg0: i32, %arg1: i32, %arg2: memref<8x128xf32, #tpu.memory_space<vmem>>, %arg3: memref<8x128xf32, #tpu.memory_space<vmem>>, %arg4: memref<1x8x128xf32, #tpu.memory_space<vmem>>, %arg5: memref<1x8x128xf32, #tpu.memory_space<vmem>>) attributes {dimension_semantics = [#tpu.dimension_semantics<parallel>, #tpu.dimension_semantics<arbitrary>], iteration_bounds = array<i64: 2, 1>, scalar_prefetch = 0 : i64, scratch_operands = 0 : i64, tpu.core_type = #tpu.core_type<tc>, window_params = [{transform_indices = @transform_0, window_bounds = array<i64: 8, 128>}, {transform_indices = @transform_1, window_bounds = array<i64: 8, 128>}, {transform_indices = @transform_2, window_bounds = array<i64: 1, 8, 128>}, {transform_indices = @transform_3, window_bounds = array<i64: 1, 8, 128>}]} {
    %c0_i32 = arith.constant 0 : i32
    %0 = arith.cmpi eq, %arg1, %c0_i32 : i32
    %1 = arith.extui %0 : i1 to i32
    %c0_i32_0 = arith.constant 0 : i32
    %2 = arith.cmpi ne, %1, %c0_i32_0 : i32
    scf.if %2 {
      %cst_8 = arith.constant 0.000000e+00 : f32
      %18 = vector.broadcast %cst_8 : f32 to vector<8x128xf32>
      %c0_9 = arith.constant 0 : index
      %c0_10 = arith.constant 0 : index
      %c0_11 = arith.constant 0 : index
      %19 = vector.load %arg4[%c0_9, %c0_10, %c0_11] : memref<1x8x128xf32, #tpu.memory_space<vmem>>, vector<1x8x128xf32>
      %20 = vector.shape_cast %19 : vector<1x8x128xf32> to vector<8x128xf32>
      %21 = vector.shape_cast %18 : vector<8x128xf32> to vector<1x8x128xf32>
      tpu.vector_store %arg4[%c0_9, %c0_10, %c0_11], %21 {strides = array<i32>} : memref<1x8x128xf32, #tpu.memory_space<vmem>>, vector<1x8x128xf32>,
      %cst_12 = arith.constant 0.000000e+00 : f32
      %22 = vector.broadcast %cst_12 : f32 to vector<8x128xf32>
      %c0_13 = arith.constant 0 : index
      %c0_14 = arith.constant 0 : index
      %c0_15 = arith.constant 0 : index
      %23 = vector.load %arg5[%c0_13, %c0_14, %c0_15] : memref<1x8x128xf32, #tpu.memory_space<vmem>>, vector<1x8x128xf32>
      %24 = vector.shape_cast %23 : vector<1x8x128xf32> to vector<8x128xf32>
      %25 = vector.shape_cast %22 : vector<8x128xf32> to vector<1x8x128xf32>
      tpu.vector_store %arg5[%c0_13, %c0_14, %c0_15], %25 {strides = array<i32>} : memref<1x8x128xf32, #tpu.memory_space<vmem>>, vector<1x8x128xf32>,
    } else {
    }
    %c1_i32 = arith.constant 1 : i32
    %3 = arith.muli %arg0, %c1_i32 : i32
    %4 = arith.addi %3, %arg1 : i32
    %c0 = arith.constant 0 : index
    %c0_1 = arith.constant 0 : index
    %5 = vector.load %arg2[%c0, %c0_1] : memref<8x128xf32, #tpu.memory_space<vmem>>, vector<8x128xf32>
    %c0_2 = arith.constant 0 : index
    %c0_3 = arith.constant 0 : index
    %6 = vector.load %arg3[%c0_2, %c0_3] : memref<8x128xf32, #tpu.memory_space<vmem>>, vector<8x128xf32>
    %7 = math.log %5 : vector<8x128xf32>
    %cst = arith.constant -1.000000e+02 : f32
    %8 = vector.broadcast %cst : f32 to vector<8x128xf32>
    %9 = arith.maximumf %7, %8 : vector<8x128xf32>
    %cst_4 = arith.constant 0.000000e+00 : f32
    %10 = vector.broadcast %cst_4 : f32 to vector<8x128xf32>
    %11 = arith.subf %10, %9 : vector<8x128xf32>
    %c2_i32 = arith.constant 2 : i32
    %12 = arith.cmpi slt, %4, %c2_i32 : i32
    %13 = arith.extui %12 : i1 to i32
    %c0_i32_5 = arith.constant 0 : i32
    %14 = arith.cmpi ne, %13, %c0_i32_5 : i32
    scf.if %14 {
      %cst_8 = arith.constant 1.000000e+00 : f32
      %18 = vector.broadcast %cst_8 : f32 to vector<8x128xf32>
      %19 = arith.cmpf oeq, %6, %18 : vector<8x128xf32>
      %20 = arith.extui %19 : vector<8x128xi1> to vector<8x128xi32>
      %21 = arith.sitofp %20 : vector<8x128xi32> to vector<8x128xf32>
      %c0_9 = arith.constant 0 : index
      %c0_10 = arith.constant 0 : index
      %c0_11 = arith.constant 0 : index
      %22 = vector.load %arg4[%c0_9, %c0_10, %c0_11] : memref<1x8x128xf32, #tpu.memory_space<vmem>>, vector<1x8x128xf32>
      %23 = vector.shape_cast %22 : vector<1x8x128xf32> to vector<8x128xf32>
      %24 = arith.mulf %21, %11 : vector<8x128xf32>
      %25 = vector.shape_cast %24 : vector<8x128xf32> to vector<1x8x128xf32>
      %cst_12 = arith.constant dense<0.000000e+00> : vector<8x128xf32>
      %26 = vector.multi_reduction <add>, %25, %cst_12 [0] : vector<1x8x128xf32> to vector<8x128xf32>
      %27 = arith.addf %23, %26 : vector<8x128xf32>
      %c0_13 = arith.constant 0 : index
      %c0_14 = arith.constant 0 : index
      %c0_15 = arith.constant 0 : index
      %28 = vector.load %arg4[%c0_13, %c0_14, %c0_15] : memref<1x8x128xf32, #tpu.memory_space<vmem>>, vector<1x8x128xf32>
      %29 = vector.shape_cast %28 : vector<1x8x128xf32> to vector<8x128xf32>
      %30 = vector.shape_cast %27 : vector<8x128xf32> to vector<1x8x128xf32>
      tpu.vector_store %arg4[%c0_13, %c0_14, %c0_15], %30 {strides = array<i32>} : memref<1x8x128xf32, #tpu.memory_space<vmem>>, vector<1x8x128xf32>,
      %c0_16 = arith.constant 0 : index
      %c0_17 = arith.constant 0 : index
      %c0_18 = arith.constant 0 : index
      %31 = vector.load %arg5[%c0_16, %c0_17, %c0_18] : memref<1x8x128xf32, #tpu.memory_space<vmem>>, vector<1x8x128xf32>
      %32 = vector.shape_cast %31 : vector<1x8x128xf32> to vector<8x128xf32>
      %33 = vector.shape_cast %21 : vector<8x128xf32> to vector<1x8x128xf32>
      %cst_19 = arith.constant dense<0.000000e+00> : vector<8x128xf32>
      %34 = vector.multi_reduction <add>, %33, %cst_19 [0] : vector<1x8x128xf32> to vector<8x128xf32>
      %35 = arith.addf %32, %34 : vector<8x128xf32>
      %c0_20 = arith.constant 0 : index
      %c0_21 = arith.constant 0 : index
      %c0_22 = arith.constant 0 : index
      %36 = vector.load %arg5[%c0_20, %c0_21, %c0_22] : memref<1x8x128xf32, #tpu.memory_space<vmem>>, vector<1x8x128xf32>
      %37 = vector.shape_cast %36 : vector<1x8x128xf32> to vector<8x128xf32>
      %38 = vector.shape_cast %35 : vector<8x128xf32> to vector<1x8x128xf32>
      tpu.vector_store %arg5[%c0_20, %c0_21, %c0_22], %38 {strides = array<i32>} : memref<1x8x128xf32, #tpu.memory_space<vmem>>, vector<1x8x128xf32>,
    } else {
    }
    %c2_i32_6 = arith.constant 2 : i32
    %15 = arith.cmpi sge, %4, %c2_i32_6 : i32
    %16 = arith.extui %15 : i1 to i32
    %c0_i32_7 = arith.constant 0 : i32
    %17 = arith.cmpi ne, %16, %c0_i32_7 : i32
    scf.if %17 {
      %18 = tpu.iota {dimensions = array<i32: 0>} : vector<8x128xi32>
      %c8_i32 = arith.constant 8 : i32
      %19 = arith.muli %4, %c8_i32 : i32
      %20 = vector.broadcast %19 : i32 to vector<8x128xi32>
      %21 = arith.addi %18, %20 : vector<8x128xi32>
      %c16_i32 = arith.constant 16 : i32
      %22 = vector.broadcast %c16_i32 : i32 to vector<8x128xi32>
      %23 = arith.cmpi slt, %21, %22 : vector<8x128xi32>
      %cst_8 = arith.constant 1.000000e+00 : f32
      %24 = vector.broadcast %cst_8 : f32 to vector<8x128xf32>
      %25 = arith.cmpf oeq, %6, %24 : vector<8x128xf32>
      %26 = arith.andi %23, %25 : vector<8x128xi1>
      %cst_9 = arith.constant 0.000000e+00 : f32
      %27 = vector.broadcast %cst_9 : f32 to vector<8x128xf32>
      %28 = arith.select %26, %11, %27 : vector<8x128xi1>, vector<8x128xf32>
      %c0_10 = arith.constant 0 : index
      %c0_11 = arith.constant 0 : index
      %c0_12 = arith.constant 0 : index
      %29 = vector.load %arg4[%c0_10, %c0_11, %c0_12] : memref<1x8x128xf32, #tpu.memory_space<vmem>>, vector<1x8x128xf32>
      %30 = vector.shape_cast %29 : vector<1x8x128xf32> to vector<8x128xf32>
      %31 = vector.shape_cast %28 : vector<8x128xf32> to vector<1x8x128xf32>
      %cst_13 = arith.constant dense<0.000000e+00> : vector<8x128xf32>
      %32 = vector.multi_reduction <add>, %31, %cst_13 [0] : vector<1x8x128xf32> to vector<8x128xf32>
      %33 = arith.addf %30, %32 : vector<8x128xf32>
      %c0_14 = arith.constant 0 : index
      %c0_15 = arith.constant 0 : index
      %c0_16 = arith.constant 0 : index
      %34 = vector.load %arg4[%c0_14, %c0_15, %c0_16] : memref<1x8x128xf32, #tpu.memory_space<vmem>>, vector<1x8x128xf32>
      %35 = vector.shape_cast %34 : vector<1x8x128xf32> to vector<8x128xf32>
      %36 = vector.shape_cast %33 : vector<8x128xf32> to vector<1x8x128xf32>
      tpu.vector_store %arg4[%c0_14, %c0_15, %c0_16], %36 {strides = array<i32>} : memref<1x8x128xf32, #tpu.memory_space<vmem>>, vector<1x8x128xf32>,
      %c0_17 = arith.constant 0 : index
      %c0_18 = arith.constant 0 : index
      %c0_19 = arith.constant 0 : index
      %37 = vector.load %arg5[%c0_17, %c0_18, %c0_19] : memref<1x8x128xf32, #tpu.memory_space<vmem>>, vector<1x8x128xf32>
      %38 = vector.shape_cast %37 : vector<1x8x128xf32> to vector<8x128xf32>
      %39 = arith.extui %26 : vector<8x128xi1> to vector<8x128xi32>
      %40 = arith.sitofp %39 : vector<8x128xi32> to vector<8x128xf32>
      %41 = vector.shape_cast %40 : vector<8x128xf32> to vector<1x8x128xf32>
      %cst_20 = arith.constant dense<0.000000e+00> : vector<8x128xf32>
      %42 = vector.multi_reduction <add>, %41, %cst_20 [0] : vector<1x8x128xf32> to vector<8x128xf32>
      %43 = arith.addf %38, %42 : vector<8x128xf32>
      %c0_21 = arith.constant 0 : index
      %c0_22 = arith.constant 0 : index
      %c0_23 = arith.constant 0 : index
      %44 = vector.load %arg5[%c0_21, %c0_22, %c0_23] : memref<1x8x128xf32, #tpu.memory_space<vmem>>, vector<1x8x128xf32>
      %45 = vector.shape_cast %44 : vector<1x8x128xf32> to vector<8x128xf32>
      %46 = vector.shape_cast %43 : vector<8x128xf32> to vector<1x8x128xf32>
      tpu.vector_store %arg5[%c0_21, %c0_22, %c0_23], %46 {strides = array<i32>} : memref<1x8x128xf32, #tpu.memory_space<vmem>>, vector<1x8x128xf32>,
    } else {
    }
    return
  }
  func.func @transform_0(%arg0: i32, %arg1: i32) -> (i32, i32) {
    %c1_i32 = arith.constant 1 : i32
    %0 = arith.muli %arg0, %c1_i32 : i32
    %1 = arith.addi %0, %arg1 : i32
    %c1_i32_0 = arith.constant 1 : i32
    %2 = arith.minsi %1, %c1_i32_0 : i32
    %c0_i32 = arith.constant 0 : i32
    %c0_i32_1 = arith.constant 0 : i32
    return %2, %c0_i32 : i32, i32
  }
  func.func @transform_1(%arg0: i32, %arg1: i32) -> (i32, i32) {
    %c1_i32 = arith.constant 1 : i32
    %0 = arith.muli %arg0, %c1_i32 : i32
    %1 = arith.addi %0, %arg1 : i32
    %c1_i32_0 = arith.constant 1 : i32
    %2 = arith.minsi %1, %c1_i32_0 : i32
    %c0_i32 = arith.constant 0 : i32
    %c0_i32_1 = arith.constant 0 : i32
    return %2, %c0_i32 : i32, i32
  }
  func.func @transform_2(%arg0: i32, %arg1: i32) -> (i32, i32, i32) {
    %c0_i32 = arith.constant 0 : i32
    %c0_i32_0 = arith.constant 0 : i32
    %c0_i32_1 = arith.constant 0 : i32
    return %arg0, %c0_i32, %c0_i32_0 : i32, i32, i32
  }
  func.func @transform_3(%arg0: i32, %arg1: i32) -> (i32, i32, i32) {
    %c0_i32 = arith.constant 0 : i32
    %c0_i32_0 = arith.constant 0 : i32
    %c0_i32_1 = arith.constant 0 : i32
    return %arg0, %c0_i32, %c0_i32_0 : i32, i32, i32
  }
}

</mosaic_0001>

<llo_original>
// kernel: tpu_custom_call.1
$region0: #{tpu_custom_call.1}
  #allocation0 [shape = 'u32[]', space=smem, size = 0x4, offset = 0x4, fixed_abs, tag = 'smem constant byte address 0x4 - core index']
  #allocation1 [shape = 'u32[144,128]{1,0:T(1,128)}', space=vmem, size = 0x12000, scoped, tag = 'internal scratch']
  %s0 = inlined_call_operand.hbm [shape: f32[16,128], index: 0, kind: input, shape index: {}]
  %s1 = inlined_call_operand.hbm [shape: f32[16,128], index: 1, kind: input, shape index: {}]
  %s2 = inlined_call_operand.hbm [shape: f32[2,8,128], index: 2, kind: output, shape index: {0}]
  %s3 = inlined_call_operand.hbm [shape: f32[2,8,128], index: 3, kind: output, shape index: {1}]
  %4 = xla_tuple %s2, %s3
  %s5 = sld [smem:[#allocation0]]
  $region69: #{tpu_custom_call.1} parent=0
    _
  %s7 = ssub.s32 1, %s5
  %s8 = scalar_select 0, %s7, %s5
  $region1: #{tpu_custom_call.1} parent=0
    #allocation2 [shape = 'u8[8192]{0}', space=vmem, size = 0x2000, scoped, tag = 'input window, operand 0']
    #allocation3 [shape = 's32[2]{0}', space=sflag, size = 0x8, scoped, tag = 'scoped memory for tpu_custom_call.1']
    #allocation4 [shape = 's32[2]{0}', space=sflag, size = 0x8, scoped, tag = 'scoped memory for tpu_custom_call.1']
    #allocation5 [shape = 'u8[8192]{0}', space=vmem, size = 0x2000, scoped, tag = 'input window, operand 1']
    #allocation6 [shape = 's32[2]{0}', space=sflag, size = 0x8, scoped, tag = 'scoped memory for tpu_custom_call.1']
    #allocation7 [shape = 'u8[8192]{0}', space=vmem, size = 0x2000, scoped, tag = 'output window, operand 0']
    #allocation8 [shape = 'u8[8192]{0}', space=vmem, size = 0x2000, scoped, tag = 'output window, operand 1']
    #allocation9 [shape = 's32[2]{0}', space=sflag, size = 0x8, scoped, tag = 'scoped memory for tpu_custom_call.1']
    %9 = vsyncpa [#allocation3], 0
    %s10 = scalar_lea.sflag [#allocation3], 1
    %11 = vsyncpa %s10, 0
    %12 = vsyncpa [#allocation6], 0
    %s13 = scalar_lea.sflag [#allocation6], 1
    %14 = vsyncpa %s13, 0
    %15 = vsyncpa [#allocation4], 0
    %s16 = scalar_lea.sflag [#allocation4], 1
    %17 = vsyncpa %s16, 0
    %18 = vsyncpa [#allocation9], 0
    %s19 = scalar_lea.sflag [#allocation9], 1
    %20 = vsyncpa %s19, 0
    loop: start=0, step=1, limit=4
    $region2: #{tpu_custom_call.1} parent=1 // loop_pre_header
      _
    $region3: #{tpu_custom_call.1} parent=1 // loop_header
      %s22 = sphi 0, %s26
      %p23 = scmp.ge.s32.totalorder %s22, 4
      %s29 = sphi 0, %s41
      %s30 = sphi 0, %s37
      %s31 = sphi 0, %s29
      %s32 = sphi 0, %s30
      %s33 = sphi 0, %s31
      %s34 = sphi 0, %s32
      %s50 = sphi 0, %s52
      %s53 = sphi 0, %s50
      %s54 = sphi 0, %s53
      %s70 = sphi 0, %s54
      %s82 = sphi 0, %s84
      %s85 = sphi 0, %s82
      %s86 = sphi 0, %s85
      %s102 = sphi 0, %s86
      %s108 = sphi 0, %s110
      %s111 = sphi 0, %s108
      %s112 = sphi 0, %s111
      %s128 = sphi 0, %s112
      %s134 = sphi 0, %s136
      %s137 = sphi 0, %s134
      %s138 = sphi 0, %s137
      %s154 = sphi 0, %s138
    $region4: #{tpu_custom_call.1} parent=1 // loop_header_branch
      %25 = sbr.rel (%p23) target = $region8
    $region5: #{tpu_custom_call.1} parent=1 // loop_body
      %s27 = ssub.s32 %s22, 1
      %s28 = ssub.s32 %s22, 2
      %s35 = sadd.s32 1, %s30
      %p36 = scmp.ge.s32.totalorder %s35, 1
      %s37 = scalar_select %p36, 0, %s35
      %s38 = sadd.s32 1, %s29
      %s39 = scalar_select %p36, %s38, %s29
      %p40 = scmp.ge.s32.totalorder %s39, 2
      %s41 = scalar_select %p40, 0, %s39
      %s42 = sadd.s32 %s29, %s30
      %p43 = scmp.lt.s32.totalorder %s42, 1
      %s44 = scalar_select %p43, %s42, 1
      %s45 = sadd.s32 %s41, %s37
      %p46 = scmp.lt.s32.totalorder %s45, 1
      %s47 = scalar_select %p46, %s45, 1
      %s48 = ssub.s32 %s44, %s47
      %p49 = scmp.eq.s32.totalorder %s48, 0
      %s51 = sadd.s32 %s50, 1
      %s52 = scalar_select %p49, %s50, %s51
      %p55 = pneg %p49
      %p56 = scmp.eq.s32.totalorder %s22, 1
      %p57 = por %p55, %p56
      %p58 = scmp.ne.s32.totalorder %s50, %s53
      %p59 = scmp.eq.s32.totalorder %s22, 0
      %p60 = por %p58, %p59
      %p61 = scmp.ne.s32.totalorder %s50, %s53
      %p62 = scmp.eq.s32.totalorder %s27, 1
      %p63 = por %p61, %p62
      %p64 = scmp.ne.s32.totalorder %s53, %s54
      %p65 = scmp.eq.s32.totalorder %s27, 0
      %p66 = por %p64, %p65
      %p67 = scmp.ne.s32.totalorder %s53, %s54
      %p68 = scmp.eq.s32.totalorder %s28, 1
      %p69 = por %p67, %p68
      %p71 = scmp.ne.s32.totalorder %s54, %s70
      %p72 = scmp.eq.s32.totalorder %s28, 0
      %p73 = por %p71, %p72
      %s74 = sadd.s32 %s29, %s30
      %p75 = scmp.lt.s32.totalorder %s74, 1
      %s76 = scalar_select %p75, %s74, 1
      %s77 = sadd.s32 %s41, %s37
      %p78 = scmp.lt.s32.totalorder %s77, 1
      %s79 = scalar_select %p78, %s77, 1
      %s80 = ssub.s32 %s76, %s79
      %p81 = scmp.eq.s32.totalorder %s80, 0
      %s83 = sadd.s32 %s82, 1
      %s84 = scalar_select %p81, %s82, %s83
      %p87 = pneg %p81
      %p88 = scmp.eq.s32.totalorder %s22, 1
      %p89 = por %p87, %p88
      %p90 = scmp.ne.s32.totalorder %s82, %s85
      %p91 = scmp.eq.s32.totalorder %s22, 0
      %p92 = por %p90, %p91
      %p93 = scmp.ne.s32.totalorder %s82, %s85
      %p94 = scmp.eq.s32.totalorder %s27, 1
      %p95 = por %p93, %p94
      %p96 = scmp.ne.s32.totalorder %s85, %s86
      %p97 = scmp.eq.s32.totalorder %s27, 0
      %p98 = por %p96, %p97
      %p99 = scmp.ne.s32.totalorder %s85, %s86
      %p100 = scmp.eq.s32.totalorder %s28, 1
      %p101 = por %p99, %p100
      %p103 = scmp.ne.s32.totalorder %s86, %s102
      %p104 = scmp.eq.s32.totalorder %s28, 0
      %p105 = por %p103, %p104
      %s106 = ssub.s32 %s29, %s41
      %p107 = scmp.eq.s32.totalorder %s106, 0
      %s109 = sadd.s32 %s108, 1
      %s110 = scalar_select %p107, %s108, %s109
      %p113 = pneg %p107
      %p114 = scmp.eq.s32.totalorder %s22, 1
      %p115 = por %p113, %p114
      %p116 = scmp.ne.s32.totalorder %s108, %s111
      %p117 = scmp.eq.s32.totalorder %s22, 0
      %p118 = por %p116, %p117
      %p119 = scmp.ne.s32.totalorder %s108, %s111
      %p120 = scmp.eq.s32.totalorder %s27, 1
      %p121 = por %p119, %p120
      %p122 = scmp.ne.s32.totalorder %s111, %s112
      %p123 = scmp.eq.s32.totalorder %s27, 0
      %p124 = por %p122, %p123
      %p125 = scmp.ne.s32.totalorder %s111, %s112
      %p126 = scmp.eq.s32.totalorder %s28, 1
      %p127 = por %p125, %p126
      %p129 = scmp.ne.s32.totalorder %s112, %s128
      %p130 = scmp.eq.s32.totalorder %s28, 0
      %p131 = por %p129, %p130
      %s132 = ssub.s32 %s29, %s41
      %p133 = scmp.eq.s32.totalorder %s132, 0
      %s135 = sadd.s32 %s134, 1
      %s136 = scalar_select %p133, %s134, %s135
      %p139 = pneg %p133
      %p140 = scmp.eq.s32.totalorder %s22, 1
      %p141 = por %p139, %p140
      %p142 = scmp.ne.s32.totalorder %s134, %s137
      %p143 = scmp.eq.s32.totalorder %s22, 0
      %p144 = por %p142, %p143
      %p145 = scmp.ne.s32.totalorder %s134, %s137
      %p146 = scmp.eq.s32.totalorder %s27, 1
      %p147 = por %p145, %p146
      %p148 = scmp.ne.s32.totalorder %s137, %s138
      %p149 = scmp.eq.s32.totalorder %s27, 0
      %p150 = por %p148, %p149
      %p151 = scmp.ne.s32.totalorder %s137, %s138
      %p152 = scmp.eq.s32.totalorder %s28, 1
      %p153 = por %p151, %p152
      %p155 = scmp.ne.s32.totalorder %s138, %s154
      %p156 = scmp.eq.s32.totalorder %s28, 0
      %p157 = por %p155, %p156
      %p158 = scmp.le.s32.totalorder 1, %s22
      %p159 = scmp.lt.s32.totalorder %s22, 3
      %p160 = pnand %p158, %p159
      %p161 = pneg %p160
      // Predicated region
      $region9: #{tpu_custom_call.1} parent=5 // pred_check
        _
      $region10: #{tpu_custom_call.1} parent=5 // pred_check_branch
        %163 = sbr.rel (%p160) target = $region12
      $region11: #{tpu_custom_call.1} parent=5 // pred_region
        %s164 = ssub.s32 %s22, 1
      $region12: #{tpu_custom_call.1} parent=5 // pred_fallthru
        _
      %p165 = scmp.lt.s32.totalorder %s22, 2
      // Predicated region
      $region13: #{tpu_custom_call.1} parent=5 // pred_check
        %p166 = pneg %p165
      $region14: #{tpu_custom_call.1} parent=5 // pred_check_branch
        %168 = sbr.rel (%p166) target = $region16
      $region15: #{tpu_custom_call.1} parent=5 // pred_region
        // Predicated region
        $region17: #{tpu_custom_call.1} parent=15 // pred_check
          %p169 = pneg %p60
        $region18: #{tpu_custom_call.1} parent=15 // pred_check_branch
          %171 = sbr.rel (%p169) target = $region20
        $region19: #{tpu_custom_call.1} parent=15 // pred_region
          %s172 = sand.u32 %s50, 1
          %s173 = scalar_lea.sflag [#allocation3], %s172
          %s174 = sand.u32 %s50, 1
          %s175 = smul.addr %s174, 8
          %s176 = scalar_lea.vmem [#allocation2], %s175
          %s177 = sadd.s32 %s29, %s30
          %p178 = scmp.lt.s32.totalorder %s177, 1
          %s179 = scalar_select %p178, %s177, 1
          %s181 = ssub.s32 128, 128
          %182 = vsyncadd %s173, %s181
          %s183 = smul.addr %s179, 128
          %s184 = scalar_lea.hbm %s0, %s183
          %s186 = sshll.u32 %s176, 4
          %s187 = int_to_ptr.vmem [resolvable:$true] %s186
          %189 = dma.hbm_to_vmem [thread:$0]  %s184, 128, %s187, %s173
        $region20: #{tpu_custom_call.1} parent=15 // pred_fallthru
          _
        // Predicated region
        $region21: #{tpu_custom_call.1} parent=15 // pred_check
          %p190 = pneg %p92
        $region22: #{tpu_custom_call.1} parent=15 // pred_check_branch
          %192 = sbr.rel (%p190) target = $region24
        $region23: #{tpu_custom_call.1} parent=15 // pred_region
          %s193 = sand.u32 %s82, 1
          %s194 = scalar_lea.sflag [#allocation6], %s193
          %s195 = sand.u32 %s82, 1
          %s196 = smul.addr %s195, 8
          %s197 = scalar_lea.vmem [#allocation5], %s196
          %s198 = sadd.s32 %s29, %s30
          %p199 = scmp.lt.s32.totalorder %s198, 1
          %s200 = scalar_select %p199, %s198, 1
          %s202 = ssub.s32 128, 128
          %203 = vsyncadd %s194, %s202
          %s204 = smul.addr %s200, 128
          %s205 = scalar_lea.hbm %s1, %s204
          %s207 = sshll.u32 %s197, 4
          %s208 = int_to_ptr.vmem [resolvable:$true] %s207
          %210 = dma.hbm_to_vmem [thread:$0]  %s205, 128, %s208, %s194
        $region24: #{tpu_custom_call.1} parent=15 // pred_fallthru
          _
      $region16: #{tpu_custom_call.1} parent=5 // pred_fallthru
        _
      %p211 = scmp.le.s32.totalorder 1, %s22
      %p212 = scmp.lt.s32.totalorder %s22, 3
      %p213 = pnand %p211, %p212
      %p214 = pneg %p213
      // Predicated region
      $region25: #{tpu_custom_call.1} parent=5 // pred_check
        _
      $region26: #{tpu_custom_call.1} parent=5 // pred_check_branch
        %216 = sbr.rel (%p213) target = $region28
      $region27: #{tpu_custom_call.1} parent=5 // pred_region
        %s217 = ssub.s32 %s22, 1
        %s218 = sand.u32 %s53, 1
        %s219 = scalar_lea.sflag [#allocation3], %s218
        %s220 = sand.u32 %s53, 1
        %s221 = smul.addr %s220, 8
        %s222 = scalar_lea.vmem [#allocation2], %s221
        // Predicated region
        $region29: #{tpu_custom_call.1} parent=27 // pred_check
          %p223 = pneg %p66
        $region30: #{tpu_custom_call.1} parent=27 // pred_check_branch
          %225 = sbr.rel (%p223) target = $region32
        $region31: #{tpu_custom_call.1} parent=27 // pred_region
          %226 = dma.done %s219, 128
        $region32: #{tpu_custom_call.1} parent=27 // pred_fallthru
          _
        %s227 = sand.u32 %s85, 1
        %s228 = scalar_lea.sflag [#allocation6], %s227
        %s229 = sand.u32 %s85, 1
        %s230 = smul.addr %s229, 8
        %s231 = scalar_lea.vmem [#allocation5], %s230
        // Predicated region
        $region33: #{tpu_custom_call.1} parent=27 // pred_check
          %p232 = pneg %p98
        $region34: #{tpu_custom_call.1} parent=27 // pred_check_branch
          %234 = sbr.rel (%p232) target = $region36
        $region35: #{tpu_custom_call.1} parent=27 // pred_region
          %235 = dma.done %s228, 128
        $region36: #{tpu_custom_call.1} parent=27 // pred_fallthru
          _
        %s236 = sand.u32 %s53, 1
        %s237 = scalar_lea.sflag [#allocation3], %s236
        %s238 = sand.u32 %s53, 1
        %s239 = smul.addr %s238, 8
        %s240 = scalar_lea.vmem [#allocation2], %s239
        %p241 = pneg %p66
        %p242 = pneg %p63
        %s243 = sand.u32 %s85, 1
        %s244 = scalar_lea.sflag [#allocation6], %s243
        %s245 = sand.u32 %s85, 1
        %s246 = smul.addr %s245, 8
        %s247 = scalar_lea.vmem [#allocation5], %s246
        %p248 = pneg %p98
        %p249 = pneg %p95
        %p250 = pneg %p124
        %p251 = pneg %p121
        %s252 = sand.u32 %s111, 1
        %s253 = scalar_lea.sflag [#allocation4], %s252
        %s254 = sand.u32 %s111, 1
        %s255 = smul.addr %s254, 8
        %s256 = scalar_lea.vmem [#allocation7], %s255
        %p257 = pneg %p150
        %p258 = pneg %p147
        %s259 = sand.u32 %s137, 1
        %s260 = scalar_lea.sflag [#allocation9], %s259
        %s261 = sand.u32 %s137, 1
        %s262 = smul.addr %s261, 8
        %s263 = scalar_lea.vmem [#allocation8], %s262
        %s264 = sadd.s32 %s31, %s32
        %p265 = scmp.lt.s32.totalorder %s264, 1
        %s266 = scalar_select %p265, %s264, 1
        %s267 = sadd.s32 %s31, %s32
        %p268 = scmp.lt.s32.totalorder %s267, 1
        %s269 = scalar_select %p268, %s267, 1
        %p270 = scmp.eq.s32.totalorder %s32, 0
        // Predicated region
        $region37: #{tpu_custom_call.1} parent=27 // pred_check
          %p271 = pneg %p270
        $region38: #{tpu_custom_call.1} parent=27 // pred_check_branch
          %273 = sbr.rel (%p271) target = $region40
        $region39: #{tpu_custom_call.1} parent=27 // pred_region
          %274 = vst [vmem:[%s256] sm:$0xff] 0.0
          %275 = vst [vmem:[%s263] sm:$0xff] 0.0
        $region40: #{tpu_custom_call.1} parent=27 // pred_fallthru
          _
        %s276 = sadd.s32 %s31, %s32
        %v277 = vld [vmem:[%s222] sm:$0xff]
        %v278 = vld [vmem:[%s231] sm:$0xff]
        %v279 = vlog2.pop %v277
        %v280 = vmul.f32 %v279, 0.6931472
        %v281 = vmax.f32 %v280, -100.0
        %v282 = vsub.f32 0.0, %v281
        %p283 = scmp.lt.s32.totalorder %s276, 2
        // Predicated region
        $region41: #{tpu_custom_call.1} parent=27 // pred_check
          %p284 = pneg %p283
        $region42: #{tpu_custom_call.1} parent=27 // pred_check_branch
          %286 = sbr.rel (%p284) target = $region44
        $region43: #{tpu_custom_call.1} parent=27 // pred_region
          %vm287 = vcmp.eq.f32.partialorder %v278, 1.0
          %v288 = vsel %vm287, 1, 0
          %v289 = vcvt.s32.f32 %v288
          %v290 = vld [vmem:[%s256] sm:$0xff]
          %v291 = vmul.f32 %v289, %v282
          %v292 = vadd.f32 %v291, 0.0
          %v293 = vadd.f32 %v290, %v292
          %294 = vst [vmem:[%s256] sm:$0xff] %v293
          %v295 = vld [vmem:[%s263] sm:$0xff]
          %v296 = vadd.f32 %v289, 0.0
          %v297 = vadd.f32 %v295, %v296
          %298 = vst [vmem:[%s263] sm:$0xff] %v297
        $region44: #{tpu_custom_call.1} parent=27 // pred_fallthru
          _
        %p299 = scmp.ge.s32.totalorder %s276, 2
        // Predicated region
        $region45: #{tpu_custom_call.1} parent=27 // pred_check
          %p300 = pneg %p299
        $region46: #{tpu_custom_call.1} parent=27 // pred_check_branch
          %302 = sbr.rel (%p300) target = $region48
        $region47: #{tpu_custom_call.1} parent=27 // pred_region
          %v303 = vlaneseq
          %v304 = vshrl.u32 %v303, 7
          %s305 = smul.u32 %s276, 8
          %v306 = vstv %s305
          %v307 = vadd.s32 %v304, %v306
          %vm308 = vcmp.lt.s32.totalorder %v307, 16
          %vm309 = vcmp.eq.f32.partialorder %v278, 1.0
          %vm310 = vmand %vm308, %vm309
          %v311 = vsel %vm310, %v282, 0.0
          %v312 = vld [vmem:[%s256] sm:$0xff]
          %v313 = vadd.f32 %v311, 0.0
          %v314 = vadd.f32 %v312, %v313
          %315 = vst [vmem:[%s256] sm:$0xff] %v314
          %v316 = vld [vmem:[%s263] sm:$0xff]
          %v317 = vsel %vm310, 1, 0
          %v318 = vcvt.s32.f32 %v317
          %v319 = vadd.f32 %v318, 0.0
          %v320 = vadd.f32 %v316, %v319
          %321 = vst [vmem:[%s263] sm:$0xff] %v320
        $region48: #{tpu_custom_call.1} parent=27 // pred_fallthru
          _
        %s322 = sand.u32 %s111, 1
        %s323 = scalar_lea.sflag [#allocation4], %s322
        %s324 = sand.u32 %s111, 1
        %s325 = smul.addr %s324, 8
        %s326 = scalar_lea.vmem [#allocation7], %s325
        %s327 = sand.u32 %s137, 1
        %s328 = scalar_lea.sflag [#allocation9], %s327
        %s329 = sand.u32 %s137, 1
        %s330 = smul.addr %s329, 8
        %s331 = scalar_lea.vmem [#allocation8], %s330
        // Predicated region
        $region49: #{tpu_custom_call.1} parent=27 // pred_check
          %p332 = pneg %p121
        $region50: #{tpu_custom_call.1} parent=27 // pred_check_branch
          %334 = sbr.rel (%p332) target = $region52
        $region51: #{tpu_custom_call.1} parent=27 // pred_region
          %s336 = ssub.s32 128, 128
          %337 = vsyncadd %s323, %s336
          %s338 = smul.addr %s31, 128
          %s339 = scalar_lea.hbm %s2, %s338
          %s341 = sshll.u32 %s326, 4
          %s342 = int_to_ptr.vmem [resolvable:$true] %s341
          %344 = dma.vmem_to_hbm [thread:$0]  %s342, 128, %s339, %s323
        $region52: #{tpu_custom_call.1} parent=27 // pred_fallthru
          _
        // Predicated region
        $region53: #{tpu_custom_call.1} parent=27 // pred_check
          %p345 = pneg %p147
        $region54: #{tpu_custom_call.1} parent=27 // pred_check_branch
          %347 = sbr.rel (%p345) target = $region56
        $region55: #{tpu_custom_call.1} parent=27 // pred_region
          %s349 = ssub.s32 128, 128
          %350 = vsyncadd %s328, %s349
          %s351 = smul.addr %s31, 128
          %s352 = scalar_lea.hbm %s3, %s351
          %s354 = sshll.u32 %s331, 4
          %s355 = int_to_ptr.vmem [resolvable:$true] %s354
          %357 = dma.vmem_to_hbm [thread:$0]  %s355, 128, %s352, %s328
        $region56: #{tpu_custom_call.1} parent=27 // pred_fallthru
          _
      $region28: #{tpu_custom_call.1} parent=5 // pred_fallthru
        _
      %p358 = scmp.le.s32.totalorder 2, %s22
      // Predicated region
      $region57: #{tpu_custom_call.1} parent=5 // pred_check
        %p359 = pneg %p358
      $region58: #{tpu_custom_call.1} parent=5 // pred_check_branch
        %361 = sbr.rel (%p359) target = $region60
      $region59: #{tpu_custom_call.1} parent=5 // pred_region
        %s362 = ssub.s32 %s22, 2
        // Predicated region
        $region61: #{tpu_custom_call.1} parent=59 // pred_check
          %p363 = pneg %p127
        $region62: #{tpu_custom_call.1} parent=59 // pred_check_branch
          %365 = sbr.rel (%p363) target = $region64
        $region63: #{tpu_custom_call.1} parent=59 // pred_region
          %s366 = sand.u32 %s112, 1
          %s367 = scalar_lea.sflag [#allocation4], %s366
          %s368 = sand.u32 %s112, 1
          %s369 = smul.addr %s368, 8
          %s370 = scalar_lea.vmem [#allocation7], %s369
          %371 = dma.done %s367, 128
        $region64: #{tpu_custom_call.1} parent=59 // pred_fallthru
          _
        // Predicated region
        $region65: #{tpu_custom_call.1} parent=59 // pred_check
          %p372 = pneg %p153
        $region66: #{tpu_custom_call.1} parent=59 // pred_check_branch
          %374 = sbr.rel (%p372) target = $region68
        $region67: #{tpu_custom_call.1} parent=59 // pred_region
          %s375 = sand.u32 %s138, 1
          %s376 = scalar_lea.sflag [#allocation9], %s375
          %s377 = sand.u32 %s138, 1
          %s378 = smul.addr %s377, 8
          %s379 = scalar_lea.vmem [#allocation8], %s378
          %380 = dma.done %s376, 128
        $region68: #{tpu_custom_call.1} parent=59 // pred_fallthru
          _
      $region60: #{tpu_custom_call.1} parent=5 // pred_fallthru
        _
    $region6: #{tpu_custom_call.1} parent=1 // loop_footer
      %s26 = sadd.s32 1, %s22
    $region7: #{tpu_custom_call.1} parent=1 // loop_footer_branch
      %21 = sbr.rel target = $region3
    $region8: #{tpu_custom_call.1} parent=1 // loop_exit
      _
    %381 = vsyncpa [#allocation3], 1
    %s382 = scalar_lea.sflag [#allocation3], 1
    %383 = vsyncpa %s382, 1
    %384 = vsyncpa [#allocation6], 1
    %s385 = scalar_lea.sflag [#allocation6], 1
    %386 = vsyncpa %s385, 1
    %387 = vsyncpa [#allocation4], 1
    %s388 = scalar_lea.sflag [#allocation4], 1
    %389 = vsyncpa %s388, 1
    %390 = vsyncpa [#allocation9], 1
    %s391 = scalar_lea.sflag [#allocation9], 1
    %392 = vsyncpa %s391, 1

</llo_original>
